<compile_context>
chip_gen: v5e
topology: v5e:2x2
jax: 0.10.0
libtpu: 0.0.40
codegen_flags: <defaults>
</compile_context>

<pallas_src>
import functools

import numpy as np
import jax
import jax.numpy as jnp
from jax import lax
from jax.experimental import pallas as pl
from jax.experimental.pallas import tpu as pltpu


def _pick_slab(R, plane_bytes, target_bytes, max_planes=None):
    """Largest divisor of R whose slab stays under `target_bytes` (and keeps
    at least two grid steps so the halo / pipeline path is exercised)."""
    best = 1
    for d in range(1, R + 1):
        if R % d:
            continue
        if d * plane_bytes > target_bytes:
            continue
        if max_planes is not None and d > max_planes:
            continue
        if d == R and R > 1:
            continue
        best = d
    return best


# ----------------------------------------------------------------------------
# Kernel 1: grid vertex lattice, normalized to [0, 1]
# ----------------------------------------------------------------------------
def _grid_vertices_kernel(o_ref, *, R, TXV):
    # o_ref block: (3, TXV, R, R) -- channels (x, y, z) for x-planes
    # [i*TXV, i*TXV + TXV).
    i = pl.program_id(0)
    scale = 1.0 / (R - 1.0)

    # integer iotas (exact), scaled once -- no float divide / floor decompose.
    y = lax.broadcasted_iota(jnp.int32, (R, R), 0).astype(jnp.float32) * scale
    z = lax.broadcasted_iota(jnp.int32, (R, R), 1).astype(jnp.float32) * scale
    o_ref[1] = jnp.broadcast_to(y[None], (TXV, R, R))
    o_ref[2] = jnp.broadcast_to(z[None], (TXV, R, R))

    # x is constant within a plane: small static unroll of splat stores.
    for p in range(TXV):
        xv = (i * TXV + p).astype(jnp.float32) * scale
        o_ref[0, p] = jnp.zeros((R, R), jnp.float32) + xv


def grid_vertices_pallas(R):
    TXV = _pick_slab(R, plane_bytes=3 * R * R * 4,
                     target_bytes=4 * 1024 * 1024, max_planes=16)
    out = pl.pallas_call(
        functools.partial(_grid_vertices_kernel, R=R, TXV=TXV),
        grid=(R // TXV,),
        out_shape=jax.ShapeDtypeStruct((3, R, R, R), jnp.float32),
        out_specs=pl.BlockSpec((3, TXV, R, R), lambda i: (0, i, 0, 0)),
        compiler_params=pltpu.CompilerParams(
            dimension_semantics=("parallel",),
            vmem_limit_bytes=32 * 1024 * 1024,
        ),
    )()
    # (3, R, R, R) -> (R^3, 3) with flat index x*R*R + y*R + z (torch meshgrid
    # 'ij' ordering).  Cheap wrapper-side layout plumbing.
    return out.reshape(3, -1).T


# ----------------------------------------------------------------------------
# Kernel 2: marching-cubes cell classification (cube index + active counts)
# ----------------------------------------------------------------------------
def _mc_classify_kernel(thr_ref, valid_ref, lvl_ref, halo_ref,
                        idx_ref, cnt_ref, *, R, TX):
    i = pl.program_id(0)
    thr = thr_ref[0]                       # SMEM scalar threshold
    RR = R * R

    lvl = lvl_ref[0]                       # (TX, RR) f32, x planes [i*TX, i*TX+TX)
    row = lax.broadcasted_iota(jnp.int32, (TX, RR), 0)   # local plane index

    # corners with dx = 0
    lo = (lvl > thr).astype(jnp.int32)

    # corners with dx = 1: roll the slab up by one plane (sublane rotate) and
    # patch the last plane with the halo plane (first plane of the next slab).
    nxt = lvl if TX == 1 else pltpu.roll(lvl, shift=TX - 1, axis=0)
    halo_b = jnp.broadcast_to(halo_ref[0], (TX, RR))
    nxt = jnp.where(row == TX - 1, halo_b, nxt)
    hi = (nxt > thr).astype(jnp.int32)

    def sh(a, dy, dz):
        # bring neighbour (y + dy, z + dz) to position (y, z): in the flattened
        # (y*R + z) lane axis that's a roll-left by dy*R + dz.  The wrap/carry
        # garbage only lands at y == R-1 or z == R-1, which is outside the
        # valid (R-1)^3 cube range and gets trimmed in the wrapper.
        amt = dy * R + dz
        if amt == 0:
            return a
        return pltpu.roll(a, shift=RR - amt, axis=1)

    # standard Lorensen–Cline corner bit ordering ("inside" == level > thr).
    cube = (sh(lo, 0, 0) * 1  + sh(hi, 0, 0) * 2 +
            sh(hi, 1, 0) * 4  + sh(lo, 1, 0) * 8 +
            sh(lo, 0, 1) * 16 + sh(hi, 0, 1) * 32 +
            sh(hi, 1, 1) * 64 + sh(lo, 1, 1) * 128)

    idx_ref[0] = cube.astype(jnp.uint8)    # lane-dense uint8 writeback

    # per-slab count of active (surface-crossing) cubes inside the valid
    # (R-1)^3 range; yz-validity comes precomputed from the wrapper, the x
    # validity from the global plane index.
    x_valid = (row + i * TX) < (R - 1)
    yz_valid = jnp.broadcast_to(valid_ref[0], (TX, RR)) != 0
    active = x_valid & yz_valid & (cube > 0) & (cube < 255)
    cnt = jnp.sum(active.astype(jnp.int32))

    r8 = lax.broadcasted_iota(jnp.int32, (8, 128), 0)
    c128 = lax.broadcasted_iota(jnp.int32, (8, 128), 1)
    cnt_ref[0] = jnp.where((r8 == 0) & (c128 == 0), cnt, 0)


def mc_classify_pallas(level, threshold, R):
    RR = R * R
    TX = _pick_slab(R, plane_bytes=R * R * 4, target_bytes=2 * 1024 * 1024)
    nslabs = R // TX

    lvl3 = jnp.asarray(level, jnp.float32).reshape(nslabs, TX, RR)
    # one x-halo plane per slab: first plane of the next slab (last slab's
    # halo is never used for a valid cube, any plane works there).
    halo = jnp.concatenate([lvl3[1:, :1, :], lvl3[-1:, :1, :]], axis=0)
    # yz-validity mask over the flattened (y, z) lane axis (for the count).
    m = jnp.arange(RR, dtype=jnp.int32)
    vyz = (((m % R) < R - 1) & ((m // R) < R - 1)).astype(jnp.int32)
    vyz = vyz.reshape(1, 1, RR)
    thr = jnp.asarray([threshold], dtype=jnp.float32)

    idx, counts = pl.pallas_call(
        functools.partial(_mc_classify_kernel, R=R, TX=TX),
        grid=(nslabs,),
        in_specs=[
            pl.BlockSpec(memory_space=pltpu.MemorySpace.SMEM),   # threshold
            pl.BlockSpec((1, 1, RR), lambda i: (0, 0, 0)),       # yz valid mask
            pl.BlockSpec((1, TX, RR), lambda i: (i, 0, 0)),      # level slab
            pl.BlockSpec((1, 1, RR), lambda i: (i, 0, 0)),       # x halo plane
        ],
        out_specs=(
            pl.BlockSpec((1, TX, RR), lambda i: (i, 0, 0)),      # cube indices
            pl.BlockSpec((1, 8, 128), lambda i: (i, 0, 0)),      # slab counts
        ),
        out_shape=(
            jax.ShapeDtypeStruct((nslabs, TX, RR), jnp.uint8),
            jax.ShapeDtypeStruct((nslabs, 8, 128), jnp.int32),
        ),
        compiler_params=pltpu.CompilerParams(
            dimension_semantics=("parallel",),
            vmem_limit_bytes=32 * 1024 * 1024,
        ),
    )(thr, vyz, lvl3, halo)

    # lane-dense full-R output -> trim the (garbage) wrap borders here.
    cube_index = idx.reshape(R, R, R)[: R - 1, : R - 1, : R - 1]
    n_active = jnp.sum(counts)
    return cube_index, n_active


# ----------------------------------------------------------------------------
# Module wrapper
# ----------------------------------------------------------------------------
class MarchingCubeHelperPallas:
    def __init__(self, resolution):
        self.resolution = resolution
        self.points_range = (0.0, 1.0)
        self.verts = None

    def grid_vertices(self):
        if self.verts is None:
            self.verts = grid_vertices_pallas(self.resolution)
        return self.verts

    def forward(self, level, threshold=0.0):
        R = self.resolution
        cube_index, n_active = mc_classify_pallas(level, threshold, R)
        # TODO(synk): dynamic-shape triangle extraction ('t_pos_idx', surface
        # verts) cannot be expressed with static Pallas shapes; returning the
        # cached lattice vertices (already normalized by 1/(R-1)) and the
        # marching-cubes classification instead.
        return {
            "v_pos": self.grid_vertices(),
            "cube_index": cube_index,
            "num_active_cubes": n_active,
        }

    __call__ = forward


# ----------------------------------------------------------------------------
# Demo / correctness check
# ----------------------------------------------------------------------------
if __name__ == "__main__":
    R = 16
    key = jax.random.PRNGKey(0)
    level = jax.random.normal(key, (R * R * R,), dtype=jnp.float32)

    helper = MarchingCubeHelperPallas(R)
    out = helper.forward(level, threshold=0.0)
    out = jax.block_until_ready(out)

    # --- pure-numpy references -------------------------------------------
    lin = np.arange(R, dtype=np.float32) / (R - 1.0)
    x, y, z = np.meshgrid(lin, lin, lin, indexing="ij")
    ref_verts = np.stack([x.reshape(-1), y.reshape(-1), z.reshape(-1)], axis=-1)
    np.testing.assert_allclose(np.asarray(out["v_pos"]), ref_verts,
                               rtol=1e-6, atol=1e-6)

    vol = np.asarray(level, dtype=np.float32).reshape(R, R, R)
    occ = (vol > 0.0).astype(np.int32)

    def c(di, dj, dk):
        return occ[di:di + R - 1, dj:dj + R - 1, dk:dk + R - 1]

    ref_idx = (c(0, 0, 0) * 1 + c(1, 0, 0) * 2 + c(1, 1, 0) * 4 + c(0, 1, 0) * 8 +
               c(0, 0, 1) * 16 + c(1, 0, 1) * 32 + c(1, 1, 1) * 64 + c(0, 1, 1) * 128)
    np.testing.assert_array_equal(
        np.asarray(out["cube_index"]).astype(np.int32), ref_idx)

    ref_count = int(np.sum((ref_idx > 0) & (ref_idx < 255)))
    assert int(np.asarray(out["num_active_cubes"])) == ref_count

    print("KERNEL_OK")
</pallas_src>

<mosaic_0001>
module attributes {stable_mosaic.version = 11 : i64} {
  func.func @_mc_classify_kernel(%arg0: i32, %arg1: memref<1xf32, #tpu.memory_space<smem>>, %arg2: memref<1x1x256xi32, #tpu.memory_space<vmem>>, %arg3: memref<1x8x256xf32, #tpu.memory_space<vmem>>, %arg4: memref<1x1x256xf32, #tpu.memory_space<vmem>>, %arg5: memref<1x8x256xi8, #tpu.memory_space<vmem>>, %arg6: memref<1x8x128xi32, #tpu.memory_space<vmem>>) attributes {dimension_semantics = [#tpu.dimension_semantics<parallel>], iteration_bounds = array<i64: 2>, scalar_prefetch = 0 : i64, scratch_operands = 0 : i64, tpu.core_type = #tpu.core_type<tc>, window_params = [{transform_indices = @transform_0, window_bounds = array<i64: 1>}, {pipeline_mode = #tpu.pipeline_mode<synchronous>, transform_indices = @transform_1, window_bounds = array<i64: 1, 1, 256>}, {transform_indices = @transform_2, window_bounds = array<i64: 1, 8, 256>}, {transform_indices = @transform_3, window_bounds = array<i64: 1, 1, 256>}, {transform_indices = @transform_4, window_bounds = array<i64: 1, 8, 256>}, {transform_indices = @transform_5, window_bounds = array<i64: 1, 8, 128>}]} {
    %c0 = arith.constant 0 : index
    %0 = memref.load %arg1[%c0] : memref<1xf32, #tpu.memory_space<smem>>
    %c0_0 = arith.constant 0 : index
    %c0_1 = arith.constant 0 : index
    %c0_2 = arith.constant 0 : index
    %1 = vector.load %arg3[%c0_0, %c0_1, %c0_2] : memref<1x8x256xf32, #tpu.memory_space<vmem>>, vector<1x8x256xf32>
    %2 = vector.shape_cast %1 : vector<1x8x256xf32> to vector<8x256xf32>
    %3 = tpu.iota {dimensions = array<i32: 0>} : vector<8x256xi32>
    %4 = vector.broadcast %0 : f32 to vector<8x256xf32>
    %5 = arith.cmpf ogt, %2, %4 : vector<8x256xf32>
    %6 = arith.extui %5 : vector<8x256xi1> to vector<8x256xi32>
    %c7_i32 = arith.constant 7 : i32
    %7 = tpu.dynamic_rotate %2 by %c7_i32 dim 0 : vector<8x256xf32>, i32 -> vector<8x256xf32>
    %c0_3 = arith.constant 0 : index
    %c0_4 = arith.constant 0 : index
    %c0_5 = arith.constant 0 : index
    %8 = vector.load %arg4[%c0_3, %c0_4, %c0_5] : memref<1x1x256xf32, #tpu.memory_space<vmem>>, vector<1x1x256xf32>
    %9 = vector.shape_cast %8 : vector<1x1x256xf32> to vector<1x256xf32>
    %10 = vector.shape_cast %9 : vector<1x256xf32> to vector<1x256xf32>
    %11 = vector.broadcast %10 : vector<1x256xf32> to vector<8x256xf32>
    %c7_i32_6 = arith.constant 7 : i32
    %12 = vector.broadcast %c7_i32_6 : i32 to vector<8x256xi32>
    %13 = arith.cmpi eq, %3, %12 : vector<8x256xi32>
    %14 = arith.select %13, %11, %7 : vector<8x256xi1>, vector<8x256xf32>
    %15 = vector.broadcast %0 : f32 to vector<8x256xf32>
    %16 = arith.cmpf ogt, %14, %15 : vector<8x256xf32>
    %17 = arith.extui %16 : vector<8x256xi1> to vector<8x256xi32>
    %c1_i32 = arith.constant 1 : i32
    %18 = vector.broadcast %c1_i32 : i32 to vector<8x256xi32>
    %19 = arith.muli %6, %18 : vector<8x256xi32>
    %c2_i32 = arith.constant 2 : i32
    %20 = vector.broadcast %c2_i32 : i32 to vector<8x256xi32>
    %21 = arith.muli %17, %20 : vector<8x256xi32>
    %22 = arith.addi %19, %21 : vector<8x256xi32>
    %c240_i32 = arith.constant 240 : i32
    %23 = tpu.dynamic_rotate %17 by %c240_i32 dim 1 : vector<8x256xi32>, i32 -> vector<8x256xi32>
    %c4_i32 = arith.constant 4 : i32
    %24 = vector.broadcast %c4_i32 : i32 to vector<8x256xi32>
    %25 = arith.muli %23, %24 : vector<8x256xi32>
    %26 = arith.addi %22, %25 : vector<8x256xi32>
    %c240_i32_7 = arith.constant 240 : i32
    %27 = tpu.dynamic_rotate %6 by %c240_i32_7 dim 1 : vector<8x256xi32>, i32 -> vector<8x256xi32>
    %c8_i32 = arith.constant 8 : i32
    %28 = vector.broadcast %c8_i32 : i32 to vector<8x256xi32>
    %29 = arith.muli %27, %28 : vector<8x256xi32>
    %30 = arith.addi %26, %29 : vector<8x256xi32>
    %c255_i32 = arith.constant 255 : i32
    %31 = tpu.dynamic_rotate %6 by %c255_i32 dim 1 : vector<8x256xi32>, i32 -> vector<8x256xi32>
    %c16_i32 = arith.constant 16 : i32
    %32 = vector.broadcast %c16_i32 : i32 to vector<8x256xi32>
    %33 = arith.muli %31, %32 : vector<8x256xi32>
    %34 = arith.addi %30, %33 : vector<8x256xi32>
    %c255_i32_8 = arith.constant 255 : i32
    %35 = tpu.dynamic_rotate %17 by %c255_i32_8 dim 1 : vector<8x256xi32>, i32 -> vector<8x256xi32>
    %c32_i32 = arith.constant 32 : i32
    %36 = vector.broadcast %c32_i32 : i32 to vector<8x256xi32>
    %37 = arith.muli %35, %36 : vector<8x256xi32>
    %38 = arith.addi %34, %37 : vector<8x256xi32>
    %c239_i32 = arith.constant 239 : i32
    %39 = tpu.dynamic_rotate %17 by %c239_i32 dim 1 : vector<8x256xi32>, i32 -> vector<8x256xi32>
    %c64_i32 = arith.constant 64 : i32
    %40 = vector.broadcast %c64_i32 : i32 to vector<8x256xi32>
    %41 = arith.muli %39, %40 : vector<8x256xi32>
    %42 = arith.addi %38, %41 : vector<8x256xi32>
    %c239_i32_9 = arith.constant 239 : i32
    %43 = tpu.dynamic_rotate %6 by %c239_i32_9 dim 1 : vector<8x256xi32>, i32 -> vector<8x256xi32>
    %c128_i32 = arith.constant 128 : i32
    %44 = vector.broadcast %c128_i32 : i32 to vector<8x256xi32>
    %45 = arith.muli %43, %44 : vector<8x256xi32>
    %46 = arith.addi %42, %45 : vector<8x256xi32>
    %47 = arith.trunci %46 : vector<8x256xi32> to vector<8x256xi8>
    %c0_10 = arith.constant 0 : index
    %c0_11 = arith.constant 0 : index
    %c0_12 = arith.constant 0 : index
    %48 = vector.load %arg5[%c0_10, %c0_11, %c0_12] : memref<1x8x256xi8, #tpu.memory_space<vmem>>, vector<1x8x256xi8>
    %49 = vector.shape_cast %48 : vector<1x8x256xi8> to vector<8x256xi8>
    %50 = vector.shape_cast %47 : vector<8x256xi8> to vector<1x8x256xi8>
    tpu.vector_store %arg5[%c0_10, %c0_11, %c0_12], %50 {strides = array<i32>} : memref<1x8x256xi8, #tpu.memory_space<vmem>>, vector<1x8x256xi8>,
    %c8_i32_13 = arith.constant 8 : i32
    %51 = arith.muli %arg0, %c8_i32_13 : i32
    %52 = vector.broadcast %51 : i32 to vector<8x256xi32>
    %53 = arith.addi %3, %52 : vector<8x256xi32>
    %c15_i32 = arith.constant 15 : i32
    %54 = vector.broadcast %c15_i32 : i32 to vector<8x256xi32>
    %55 = arith.cmpi slt, %53, %54 : vector<8x256xi32>
    %c0_14 = arith.constant 0 : index
    %c0_15 = arith.constant 0 : index
    %c0_16 = arith.constant 0 : index
    %56 = vector.load %arg2[%c0_14, %c0_15, %c0_16] : memref<1x1x256xi32, #tpu.memory_space<vmem>>, vector<1x1x256xi32>
    %57 = vector.shape_cast %56 : vector<1x1x256xi32> to vector<1x256xi32>
    %58 = vector.shape_cast %57 : vector<1x256xi32> to vector<1x256xi32>
    %59 = vector.broadcast %58 : vector<1x256xi32> to vector<8x256xi32>
    %c0_i32 = arith.constant 0 : i32
    %60 = vector.broadcast %c0_i32 : i32 to vector<8x256xi32>
    %61 = arith.cmpi ne, %59, %60 : vector<8x256xi32>
    %62 = arith.andi %55, %61 : vector<8x256xi1>
    %c0_i32_17 = arith.constant 0 : i32
    %63 = vector.broadcast %c0_i32_17 : i32 to vector<8x256xi32>
    %64 = arith.cmpi sgt, %46, %63 : vector<8x256xi32>
    %65 = arith.andi %62, %64 : vector<8x256xi1>
    %c255_i32_18 = arith.constant 255 : i32
    %66 = vector.broadcast %c255_i32_18 : i32 to vector<8x256xi32>
    %67 = arith.cmpi slt, %46, %66 : vector<8x256xi32>
    %68 = arith.andi %65, %67 : vector<8x256xi1>
    %69 = arith.extui %68 : vector<8x256xi1> to vector<8x256xi32>
    %70 = vector.shape_cast %69 : vector<8x256xi32> to vector<1x8x256xi32>
    %cst = arith.constant dense<0> : vector<1xi32>
    %71 = vector.multi_reduction <add>, %70, %cst [1, 2] : vector<1x8x256xi32> to vector<1xi32>
    %72 = vector.shape_cast %71 : vector<1xi32> to vector<1x1x1xi32>
    %73 = vector.extract %72[0, 0, 0] : i32 from vector<1x1x1xi32>
    %74 = tpu.iota {dimensions = array<i32: 0>} : vector<8x128xi32>
    %75 = tpu.iota {dimensions = array<i32: 1>} : vector<8x128xi32>
    %c0_i32_19 = arith.constant 0 : i32
    %76 = vector.broadcast %c0_i32_19 : i32 to vector<8x128xi32>
    %77 = arith.cmpi eq, %74, %76 : vector<8x128xi32>
    %c0_i32_20 = arith.constant 0 : i32
    %78 = vector.broadcast %c0_i32_20 : i32 to vector<8x128xi32>
    %79 = arith.cmpi eq, %75, %78 : vector<8x128xi32>
    %80 = arith.andi %77, %79 : vector<8x128xi1>
    %c0_i32_21 = arith.constant 0 : i32
    %81 = vector.broadcast %73 : i32 to vector<8x128xi32>
    %82 = vector.broadcast %c0_i32_21 : i32 to vector<8x128xi32>
    %83 = arith.select %80, %81, %82 : vector<8x128xi1>, vector<8x128xi32>
    %c0_22 = arith.constant 0 : index
    %c0_23 = arith.constant 0 : index
    %c0_24 = arith.constant 0 : index
    %84 = vector.load %arg6[%c0_22, %c0_23, %c0_24] : memref<1x8x128xi32, #tpu.memory_space<vmem>>, vector<1x8x128xi32>
    %85 = vector.shape_cast %84 : vector<1x8x128xi32> to vector<8x128xi32>
    %86 = vector.shape_cast %83 : vector<8x128xi32> to vector<1x8x128xi32>
    tpu.vector_store %arg6[%c0_22, %c0_23, %c0_24], %86 {strides = array<i32>} : memref<1x8x128xi32, #tpu.memory_space<vmem>>, vector<1x8x128xi32>,
    return
  }
  func.func @transform_0(%arg0: i32) -> i32 {
    %c0_i32 = arith.constant 0 : i32
    %c0_i32_0 = arith.constant 0 : i32
    return %c0_i32 : i32
  }
  func.func @transform_1(%arg0: i32) -> (i32, i32, i32) {
    %c0_i32 = arith.constant 0 : i32
    %c0_i32_0 = arith.constant 0 : i32
    %c0_i32_1 = arith.constant 0 : i32
    %c0_i32_2 = arith.constant 0 : i32
    return %c0_i32, %c0_i32_0, %c0_i32_1 : i32, i32, i32
  }
  func.func @transform_2(%arg0: i32) -> (i32, i32, i32) {
    %c0_i32 = arith.constant 0 : i32
    %c0_i32_0 = arith.constant 0 : i32
    %c0_i32_1 = arith.constant 0 : i32
    return %arg0, %c0_i32, %c0_i32_0 : i32, i32, i32
  }
  func.func @transform_3(%arg0: i32) -> (i32, i32, i32) {
    %c0_i32 = arith.constant 0 : i32
    %c0_i32_0 = arith.constant 0 : i32
    %c0_i32_1 = arith.constant 0 : i32
    return %arg0, %c0_i32, %c0_i32_0 : i32, i32, i32
  }
  func.func @transform_4(%arg0: i32) -> (i32, i32, i32) {
    %c0_i32 = arith.constant 0 : i32
    %c0_i32_0 = arith.constant 0 : i32
    %c0_i32_1 = arith.constant 0 : i32
    return %arg0, %c0_i32, %c0_i32_0 : i32, i32, i32
  }
  func.func @transform_5(%arg0: i32) -> (i32, i32, i32) {
    %c0_i32 = arith.constant 0 : i32
    %c0_i32_0 = arith.constant 0 : i32
    %c0_i32_1 = arith.constant 0 : i32
    return %arg0, %c0_i32, %c0_i32_0 : i32, i32, i32
  }
}

</mosaic_0001>

<llo_original>
// kernel: tpu_custom_call.1
$region0: #{tpu_custom_call.1}
  #allocation0 [shape = 'u32[]', space=smem, size = 0x4, offset = 0x4, fixed_abs, tag = 'smem constant byte address 0x4 - core index']
  #allocation1 [shape = 'u32[72,128]{1,0:T(1,128)}', space=vmem, size = 0x9000, scoped, tag = 'internal scratch']
  #allocation2 [shape = 'f32[1]{0:T(128)S(6)}', space=smem, size = 0x200, scoped, tag = 'scoped memory for tpu_custom_call.1']
  %s0 = inlined_call_operand.<no memory space> [shape: f32[1], index: 0, kind: input, shape index: {}]
  %s1 = inlined_call_operand.vmem [shape: s32[1,1,256], index: 1, kind: input, shape index: {}]
  %s2 = inlined_call_operand.hbm [shape: f32[2,8,256], index: 2, kind: input, shape index: {}]
  %s3 = inlined_call_operand.hbm [shape: f32[2,1,256], index: 3, kind: input, shape index: {}]
  %s4 = inlined_call_operand.hbm [shape: u8[2,8,256], index: 4, kind: output, shape index: {0}]
  %s5 = inlined_call_operand.hbm [shape: s32[2,8,128], index: 5, kind: output, shape index: {1}]
  %6 = xla_tuple %s4, %s5
  %s7 = sld [smem:[#allocation0]]
  $region65: #{tpu_custom_call.1} parent=0
    _
  %s9 = ssub.s32 1, %s7
  %s10 = scalar_select 0, %s9, %s7
  %11 = sst [smem:[#allocation2]] %s0
  $region1: #{tpu_custom_call.1} parent=0
    #allocation3 [shape = 'u8[16384]{0}', space=vmem, size = 0x4000, scoped, tag = 'input window, operand 2']
    #allocation4 [shape = 's32[2]{0}', space=sflag, size = 0x8, scoped, tag = 'scoped memory for tpu_custom_call.1']
    #allocation5 [shape = 's32[2]{0}', space=sflag, size = 0x8, scoped, tag = 'scoped memory for tpu_custom_call.1']
    #allocation6 [shape = 'u8[2048]{0}', space=vmem, size = 0x800, scoped, tag = 'input window, operand 3']
    #allocation7 [shape = 's32[2]{0}', space=sflag, size = 0x8, scoped, tag = 'scoped memory for tpu_custom_call.1']
    #allocation8 [shape = 'u8[4096]{0}', space=vmem, size = 0x1000, scoped, tag = 'output window, operand 0']
    #allocation9 [shape = 'u8[8192]{0}', space=vmem, size = 0x2000, scoped, tag = 'output window, operand 1']
    #allocation10 [shape = 's32[2]{0}', space=sflag, size = 0x8, scoped, tag = 'scoped memory for tpu_custom_call.1']
    %12 = vsyncpa [#allocation4], 0
    %s13 = scalar_lea.sflag [#allocation4], 1
    %14 = vsyncpa %s13, 0
    %15 = vsyncpa [#allocation7], 0
    %s16 = scalar_lea.sflag [#allocation7], 1
    %17 = vsyncpa %s16, 0
    %18 = vsyncpa [#allocation5], 0
    %s19 = scalar_lea.sflag [#allocation5], 1
    %20 = vsyncpa %s19, 0
    %21 = vsyncpa [#allocation10], 0
    %s22 = scalar_lea.sflag [#allocation10], 1
    %23 = vsyncpa %s22, 0
    loop: start=0, step=1, limit=4
    $region2: #{tpu_custom_call.1} parent=1 // loop_pre_header
      _
    $region3: #{tpu_custom_call.1} parent=1 // loop_header
      %s25 = sphi 0, %s29
      %p26 = scmp.ge.s32.totalorder %s25, 4
      %s33 = sphi 0, %s33
      %s35 = sphi 0, %s33
      %s36 = sphi 0, %s35
      %s50 = sphi 0, %s36
      %s54 = sphi 0, %s54
      %s56 = sphi 0, %s54
      %s57 = sphi 0, %s56
      %s71 = sphi 0, %s57
      %s77 = sphi 0, %s79
      %s80 = sphi 0, %s77
      %s81 = sphi 0, %s80
      %s97 = sphi 0, %s81
      %s103 = sphi 0, %s105
      %s106 = sphi 0, %s103
      %s107 = sphi 0, %s106
      %s123 = sphi 0, %s107
      %s129 = sphi 0, %s131
      %s132 = sphi 0, %s129
      %s133 = sphi 0, %s132
      %s149 = sphi 0, %s133
      %s155 = sphi 0, %s157
      %s158 = sphi 0, %s155
      %s159 = sphi 0, %s158
      %s175 = sphi 0, %s159
    $region4: #{tpu_custom_call.1} parent=1 // loop_header_branch
      %28 = sbr.rel (%p26) target = $region8
    $region5: #{tpu_custom_call.1} parent=1 // loop_body
      %s30 = ssub.s32 %s25, 1
      %s31 = ssub.s32 %s25, 2
      %s32 = sadd.s32 %s25, 1
      %s34 = sadd.s32 %s33, 1
      %p37 = scmp.eq.s32.totalorder %s25, 1
      %p38 = scmp.ne.s32.totalorder %s33, %s35
      %p39 = scmp.eq.s32.totalorder %s25, 0
      %p40 = por %p38, %p39
      %p41 = scmp.ne.s32.totalorder %s33, %s35
      %p42 = scmp.eq.s32.totalorder %s30, 1
      %p43 = por %p41, %p42
      %p44 = scmp.ne.s32.totalorder %s35, %s36
      %p45 = scmp.eq.s32.totalorder %s30, 0
      %p46 = por %p44, %p45
      %p47 = scmp.ne.s32.totalorder %s35, %s36
      %p48 = scmp.eq.s32.totalorder %s31, 1
      %p49 = por %p47, %p48
      %p51 = scmp.ne.s32.totalorder %s36, %s50
      %p52 = scmp.eq.s32.totalorder %s31, 0
      %p53 = por %p51, %p52
      %s55 = sadd.s32 %s54, 1
      %p58 = scmp.eq.s32.totalorder %s25, 1
      %p59 = scmp.ne.s32.totalorder %s54, %s56
      %p60 = scmp.eq.s32.totalorder %s25, 0
      %p61 = por %p59, %p60
      %p62 = scmp.ne.s32.totalorder %s54, %s56
      %p63 = scmp.eq.s32.totalorder %s30, 1
      %p64 = por %p62, %p63
      %p65 = scmp.ne.s32.totalorder %s56, %s57
      %p66 = scmp.eq.s32.totalorder %s30, 0
      %p67 = por %p65, %p66
      %p68 = scmp.ne.s32.totalorder %s56, %s57
      %p69 = scmp.eq.s32.totalorder %s31, 1
      %p70 = por %p68, %p69
      %p72 = scmp.ne.s32.totalorder %s57, %s71
      %p73 = scmp.eq.s32.totalorder %s31, 0
      %p74 = por %p72, %p73
      %s75 = ssub.s32 %s25, %s32
      %p76 = scmp.eq.s32.totalorder %s75, 0
      %s78 = sadd.s32 %s77, 1
      %s79 = scalar_select %p76, %s77, %s78
      %p82 = pneg %p76
      %p83 = scmp.eq.s32.totalorder %s25, 1
      %p84 = por %p82, %p83
      %p85 = scmp.ne.s32.totalorder %s77, %s80
      %p86 = scmp.eq.s32.totalorder %s25, 0
      %p87 = por %p85, %p86
      %p88 = scmp.ne.s32.totalorder %s77, %s80
      %p89 = scmp.eq.s32.totalorder %s30, 1
      %p90 = por %p88, %p89
      %p91 = scmp.ne.s32.totalorder %s80, %s81
      %p92 = scmp.eq.s32.totalorder %s30, 0
      %p93 = por %p91, %p92
      %p94 = scmp.ne.s32.totalorder %s80, %s81
      %p95 = scmp.eq.s32.totalorder %s31, 1
      %p96 = por %p94, %p95
      %p98 = scmp.ne.s32.totalorder %s81, %s97
      %p99 = scmp.eq.s32.totalorder %s31, 0
      %p100 = por %p98, %p99
      %s101 = ssub.s32 %s25, %s32
      %p102 = scmp.eq.s32.totalorder %s101, 0
      %s104 = sadd.s32 %s103, 1
      %s105 = scalar_select %p102, %s103, %s104
      %p108 = pneg %p102
      %p109 = scmp.eq.s32.totalorder %s25, 1
      %p110 = por %p108, %p109
      %p111 = scmp.ne.s32.totalorder %s103, %s106
      %p112 = scmp.eq.s32.totalorder %s25, 0
      %p113 = por %p111, %p112
      %p114 = scmp.ne.s32.totalorder %s103, %s106
      %p115 = scmp.eq.s32.totalorder %s30, 1
      %p116 = por %p114, %p115
      %p117 = scmp.ne.s32.totalorder %s106, %s107
      %p118 = scmp.eq.s32.totalorder %s30, 0
      %p119 = por %p117, %p118
      %p120 = scmp.ne.s32.totalorder %s106, %s107
      %p121 = scmp.eq.s32.totalorder %s31, 1
      %p122 = por %p120, %p121
      %p124 = scmp.ne.s32.totalorder %s107, %s123
      %p125 = scmp.eq.s32.totalorder %s31, 0
      %p126 = por %p124, %p125
      %s127 = ssub.s32 %s25, %s32
      %p128 = scmp.eq.s32.totalorder %s127, 0
      %s130 = sadd.s32 %s129, 1
      %s131 = scalar_select %p128, %s129, %s130
      %p134 = pneg %p128
      %p135 = scmp.eq.s32.totalorder %s25, 1
      %p136 = por %p134, %p135
      %p137 = scmp.ne.s32.totalorder %s129, %s132
      %p138 = scmp.eq.s32.totalorder %s25, 0
      %p139 = por %p137, %p138
      %p140 = scmp.ne.s32.totalorder %s129, %s132
      %p141 = scmp.eq.s32.totalorder %s30, 1
      %p142 = por %p140, %p141
      %p143 = scmp.ne.s32.totalorder %s132, %s133
      %p144 = scmp.eq.s32.totalorder %s30, 0
      %p145 = por %p143, %p144
      %p146 = scmp.ne.s32.totalorder %s132, %s133
      %p147 = scmp.eq.s32.totalorder %s31, 1
      %p148 = por %p146, %p147
      %p150 = scmp.ne.s32.totalorder %s133, %s149
      %p151 = scmp.eq.s32.totalorder %s31, 0
      %p152 = por %p150, %p151
      %s153 = ssub.s32 %s25, %s32
      %p154 = scmp.eq.s32.totalorder %s153, 0
      %s156 = sadd.s32 %s155, 1
      %s157 = scalar_select %p154, %s155, %s156
      %p160 = pneg %p154
      %p161 = scmp.eq.s32.totalorder %s25, 1
      %p162 = por %p160, %p161
      %p163 = scmp.ne.s32.totalorder %s155, %s158
      %p164 = scmp.eq.s32.totalorder %s25, 0
      %p165 = por %p163, %p164
      %p166 = scmp.ne.s32.totalorder %s155, %s158
      %p167 = scmp.eq.s32.totalorder %s30, 1
      %p168 = por %p166, %p167
      %p169 = scmp.ne.s32.totalorder %s158, %s159
      %p170 = scmp.eq.s32.totalorder %s30, 0
      %p171 = por %p169, %p170
      %p172 = scmp.ne.s32.totalorder %s158, %s159
      %p173 = scmp.eq.s32.totalorder %s31, 1
      %p174 = por %p172, %p173
      %p176 = scmp.ne.s32.totalorder %s159, %s175
      %p177 = scmp.eq.s32.totalorder %s31, 0
      %p178 = por %p176, %p177
      %p179 = scmp.le.s32.totalorder 1, %s25
      %p180 = scmp.lt.s32.totalorder %s25, 3
      %p181 = pnand %p179, %p180
      %p182 = pneg %p181
      // Predicated region
      $region9: #{tpu_custom_call.1} parent=5 // pred_check
        _
      $region10: #{tpu_custom_call.1} parent=5 // pred_check_branch
        %184 = sbr.rel (%p181) target = $region12
      $region11: #{tpu_custom_call.1} parent=5 // pred_region
        %s185 = ssub.s32 %s25, 1
        // Predicated region
        $region13: #{tpu_custom_call.1} parent=11 // pred_check
          %p186 = pneg %p46
        $region14: #{tpu_custom_call.1} parent=11 // pred_check_branch
          %188 = sbr.rel (%p186) target = $region16
        $region15: #{tpu_custom_call.1} parent=11 // pred_region
          _
        $region16: #{tpu_custom_call.1} parent=11 // pred_fallthru
          _
        // Predicated region
        $region17: #{tpu_custom_call.1} parent=11 // pred_check
          %p189 = pneg %p67
        $region18: #{tpu_custom_call.1} parent=11 // pred_check_branch
          %191 = sbr.rel (%p189) target = $region20
        $region19: #{tpu_custom_call.1} parent=11 // pred_region
          _
        $region20: #{tpu_custom_call.1} parent=11 // pred_fallthru
          _
      $region12: #{tpu_custom_call.1} parent=5 // pred_fallthru
        _
      %p192 = scmp.lt.s32.totalorder %s25, 2
      // Predicated region
      $region21: #{tpu_custom_call.1} parent=5 // pred_check
        %p193 = pneg %p192
      $region22: #{tpu_custom_call.1} parent=5 // pred_check_branch
        %195 = sbr.rel (%p193) target = $region24
      $region23: #{tpu_custom_call.1} parent=5 // pred_region
        // Predicated region
        $region25: #{tpu_custom_call.1} parent=23 // pred_check
          %p196 = pneg %p87
        $region26: #{tpu_custom_call.1} parent=23 // pred_check_branch
          %198 = sbr.rel (%p196) target = $region28
        $region27: #{tpu_custom_call.1} parent=23 // pred_region
          %s199 = sand.u32 %s77, 1
          %s200 = scalar_lea.sflag [#allocation4], %s199
          %s201 = sand.u32 %s77, 1
          %s202 = smul.addr %s201, 16
          %s203 = scalar_lea.vmem [#allocation3], %s202
          %205 = vsyncadd %s200, 0
          %s206 = smul.addr %s25, 2
          %s207 = smul.addr %s206, 8
          %s208 = scalar_lea.hbm %s2, %s207
          %s210 = sshll.u32 %s208, 4
          %s211 = int_to_ptr.hbm [resolvable:$true] %s210
          %s212 = sshll.u32 %s203, 4
          %s213 = int_to_ptr.vmem [resolvable:$true] %s212
          %215 = dma.hbm_to_vmem [thread:$0]  %s211, 256, %s213, %s200
        $region28: #{tpu_custom_call.1} parent=23 // pred_fallthru
          _
        // Predicated region
        $region29: #{tpu_custom_call.1} parent=23 // pred_check
          %p216 = pneg %p113
        $region30: #{tpu_custom_call.1} parent=23 // pred_check_branch
          %218 = sbr.rel (%p216) target = $region32
        $region31: #{tpu_custom_call.1} parent=23 // pred_region
          %s219 = sand.u32 %s103, 1
          %s220 = scalar_lea.sflag [#allocation7], %s219
          %s221 = sand.u32 %s103, 1
          %s222 = smul.addr %s221, 2
          %s223 = scalar_lea.vmem [#allocation6], %s222
          %225 = vsyncadd %s220, 0
          %s226 = smul.addr %s25, 2
          %s227 = scalar_lea.hbm %s3, %s226
          %s229 = sshll.u32 %s227, 4
          %s230 = int_to_ptr.hbm [resolvable:$true] %s229
          %s231 = sshll.u32 %s223, 4
          %s232 = int_to_ptr.vmem [resolvable:$true] %s231
          %234 = dma.hbm_to_vmem [thread:$0]  %s230, 32, %s232, %s220
        $region32: #{tpu_custom_call.1} parent=23 // pred_fallthru
          _
      $region24: #{tpu_custom_call.1} parent=5 // pred_fallthru
        _
      %p235 = scmp.le.s32.totalorder 1, %s25
      %p236 = scmp.lt.s32.totalorder %s25, 3
      %p237 = pnand %p235, %p236
      %p238 = pneg %p237
      // Predicated region
      $region33: #{tpu_custom_call.1} parent=5 // pred_check
        _
      $region34: #{tpu_custom_call.1} parent=5 // pred_check_branch
        %240 = sbr.rel (%p237) target = $region36
      $region35: #{tpu_custom_call.1} parent=5 // pred_region
        %s241 = ssub.s32 %s25, 1
        %s242 = sand.u32 %s80, 1
        %s243 = scalar_lea.sflag [#allocation4], %s242
        %s244 = sand.u32 %s80, 1
        %s245 = smul.addr %s244, 16
        %s246 = scalar_lea.vmem [#allocation3], %s245
        // Predicated region
        $region37: #{tpu_custom_call.1} parent=35 // pred_check
          %p247 = pneg %p93
        $region38: #{tpu_custom_call.1} parent=35 // pred_check_branch
          %249 = sbr.rel (%p247) target = $region40
        $region39: #{tpu_custom_call.1} parent=35 // pred_region
          %251 = dma.done %s243, 256
        $region40: #{tpu_custom_call.1} parent=35 // pred_fallthru
          _
        %s252 = sand.u32 %s106, 1
        %s253 = scalar_lea.sflag [#allocation7], %s252
        %s254 = sand.u32 %s106, 1
        %s255 = smul.addr %s254, 2
        %s256 = scalar_lea.vmem [#allocation6], %s255
        // Predicated region
        $region41: #{tpu_custom_call.1} parent=35 // pred_check
          %p257 = pneg %p119
        $region42: #{tpu_custom_call.1} parent=35 // pred_check_branch
          %259 = sbr.rel (%p257) target = $region44
        $region43: #{tpu_custom_call.1} parent=35 // pred_region
          %261 = dma.done %s253, 32
        $region44: #{tpu_custom_call.1} parent=35 // pred_fallthru
          _
        %p262 = pneg %p46
        %p263 = pneg %p43
        %p264 = pneg %p67
        %p265 = pneg %p64
        %s266 = sand.u32 %s80, 1
        %s267 = scalar_lea.sflag [#allocation4], %s266
        %s268 = sand.u32 %s80, 1
        %s269 = smul.addr %s268, 16
        %s270 = scalar_lea.vmem [#allocation3], %s269
        %p271 = pneg %p93
        %p272 = pneg %p90
        %s273 = sand.u32 %s106, 1
        %s274 = scalar_lea.sflag [#allocation7], %s273
        %s275 = sand.u32 %s106, 1
        %s276 = smul.addr %s275, 2
        %s277 = scalar_lea.vmem [#allocation6], %s276
        %p278 = pneg %p119
        %p279 = pneg %p116
        %p280 = pneg %p145
        %p281 = pneg %p142
        %s282 = sand.u32 %s132, 1
        %s283 = scalar_lea.sflag [#allocation5], %s282
        %s284 = sand.u32 %s132, 1
        %s285 = smul.addr %s284, 4
        %s286 = scalar_lea.vmem [#allocation8], %s285
        %p287 = pneg %p171
        %p288 = pneg %p168
        %s289 = sand.u32 %s158, 1
        %s290 = scalar_lea.sflag [#allocation10], %s289
        %s291 = sand.u32 %s158, 1
        %s292 = smul.addr %s291, 8
        %s293 = scalar_lea.vmem [#allocation9], %s292
        %s294 = sld [smem:[#allocation2]]
        %v295 = vld [vmem:[%s246] sm:$0xff]
        %v296 = vld [vmem:[%s246 + $0x8] sm:$0xff]
        %v297 = vlaneseq
        %v298 = vshrl.u32 %v297, 7
        %v299 = vstv %s294
        %vm300 = vcmp.gt.f32.partialorder %v295, %v299
        %vm301 = vcmp.gt.f32.partialorder %v296, %v299
        %v302 = vsel %vm300, 1, 0
        %v303 = vsel %vm301, 1, 0
        %v304 = vrot.slane %v295, 1
        %v305 = vrot.slane %v296, 1
        %v306 = vld [vmem:[%s256] sm:$0x3]
        %v308 = vperm.slane %v306, 0
        %v309 = vperm.slane %v306, 1
        %vm312 = vcmp.eq.s32.totalorder %v298, 7
        %v313 = vsel %vm312, %v308, %v304
        %v314 = vsel %vm312, %v309, %v305
        %vm315 = vcmp.gt.f32.partialorder %v313, %v299
        %vm316 = vcmp.gt.f32.partialorder %v314, %v299
        %v317 = vsel %vm315, 1, 0
        %v318 = vsel %vm316, 1, 0
        %v319 = vmul.u32 %v317, 2
        %v320 = vmul.u32 %v318, 2
        %v321 = vadd.s32 %v302, %v319
        %v322 = vadd.s32 %v303, %v320
        %323 = vrot.lane.b32.xlu0 %v317, 112
        %v324 = vpop.permute.xlu0 %323
        %325 = vrot.lane.b32.xlu0 %v318, 112
        %v326 = vpop.permute.xlu0 %325
        %v327 = vlaneseq
        %v328 = vand.u32 %v327, 127
        %vm329 = vcmp.lt.s32.totalorder %v328, 112
        %v330 = vsel %vm329, %v324, %v326
        %v331 = vsel %vm329, %v326, %v324
        %v332 = vmul.u32 %v330, 4
        %v333 = vmul.u32 %v331, 4
        %v334 = vadd.s32 %v321, %v332
        %v335 = vadd.s32 %v322, %v333
        %336 = vrot.lane.b32.xlu0 %v302, 112
        %v337 = vpop.permute.xlu0 %336
        %338 = vrot.lane.b32.xlu0 %v303, 112
        %v339 = vpop.permute.xlu0 %338
        %v340 = vsel %vm329, %v337, %v339
        %v341 = vsel %vm329, %v339, %v337
        %v342 = vmul.u32 %v340, 8
        %v343 = vmul.u32 %v341, 8
        %v344 = vadd.s32 %v334, %v342
        %v345 = vadd.s32 %v335, %v343
        %346 = vrot.lane.b32.xlu0 %v302, 127
        %v347 = vpop.permute.xlu0 %346
        %348 = vrot.lane.b32.xlu0 %v303, 127
        %v349 = vpop.permute.xlu0 %348
        %vm350 = vcmp.lt.s32.totalorder %v328, 127
        %v351 = vsel %vm350, %v347, %v349
        %v352 = vsel %vm350, %v349, %v347
        %v353 = vmul.u32 %v351, 16
        %v354 = vmul.u32 %v352, 16
        %v355 = vadd.s32 %v344, %v353
        %v356 = vadd.s32 %v345, %v354
        %357 = vrot.lane.b32.xlu0 %v317, 127
        %v358 = vpop.permute.xlu0 %357
        %359 = vrot.lane.b32.xlu0 %v318, 127
        %v360 = vpop.permute.xlu0 %359
        %v361 = vsel %vm350, %v358, %v360
        %v362 = vsel %vm350, %v360, %v358
        %v363 = vmul.u32 %v361, 32
        %v364 = vmul.u32 %v362, 32
        %v365 = vadd.s32 %v355, %v363
        %v366 = vadd.s32 %v356, %v364
        %367 = vrot.lane.b32.xlu0 %v317, 111
        %v368 = vpop.permute.xlu0 %367
        %369 = vrot.lane.b32.xlu0 %v318, 111
        %v370 = vpop.permute.xlu0 %369
        %vm371 = vcmp.lt.s32.totalorder %v328, 111
        %v372 = vsel %vm371, %v368, %v370
        %v373 = vsel %vm371, %v370, %v368
        %v374 = vmul.u32 %v372, 64
        %v375 = vmul.u32 %v373, 64
        %v376 = vadd.s32 %v365, %v374
        %v377 = vadd.s32 %v366, %v375
        %378 = vrot.lane.b32.xlu0 %v302, 111
        %v379 = vpop.permute.xlu0 %378
        %380 = vrot.lane.b32.xlu0 %v303, 111
        %v381 = vpop.permute.xlu0 %380
        %v382 = vsel %vm371, %v379, %v381
        %v383 = vsel %vm371, %v381, %v379
        %v384 = vmul.u32 %v382, 128
        %v385 = vmul.u32 %v383, 128
        %v386 = vadd.s32 %v376, %v384
        %v387 = vadd.s32 %v377, %v385
        %v388 = vpack.c.b16 %v387, %v386
        %v389 = vpack.c.b8 %v388, %v388
        %390 = vst [vmem:[%s286] sm:$0xf] %v389
        %s391 = smul.u32 %s30, 8
        %v392 = vstv %s391
        %v393 = vadd.s32 %v298, %v392
        %vm394 = vcmp.lt.s32.totalorder %v393, 15
        %v395 = vld [vmem:[%s1] sm:$0x3]
        %v396 = vperm.slane %v395, 0
        %v397 = vperm.slane %v395, 1
        %vm398 = vcmp.ne.s32.totalorder %v396, 0
        %vm399 = vcmp.ne.s32.totalorder %v397, 0
        %vm400 = vmand %vm394, %vm398
        %vm401 = vmand %vm394, %vm399
        %vm402 = vcmp.gt.s32.totalorder %v386, 0
        %vm403 = vcmp.gt.s32.totalorder %v387, 0
        %vm404 = vmand %vm400, %vm402
        %vm405 = vmand %vm401, %vm403
        %vm406 = vcmp.lt.s32.totalorder %v386, 255
        %vm407 = vcmp.lt.s32.totalorder %v387, 255
        %vm408 = vmand %vm404, %vm406
        %vm409 = vmand %vm405, %vm407
        %v410 = vsel %vm408, 1, 0
        %v411 = vsel %vm409, 1, 0
        %v412 = vadd.s32 %v410, %v411
        %v413 = vand.u32 %v412, 65535
        %v414 = vshrl.u32 %v412, 16
        %v415 = vcvt.s32.f32 %v413
        %v416 = vcvt.s32.f32 %v414
        %417 = vadd.xlane.f32.xlu0 %v415
        %v418 = vpop.xlane.xlu0 %417
        %419 = vadd.xlane.f32.xlu0 %v416
        %v420 = vpop.xlane.xlu0 %419
        %v421 = vcvt.f32.s32 %v418
        %v422 = vcvt.f32.s32 %v420
        %v423 = vshll.u32 %v422, 16
        %v424 = vadd.s32 %v423, %v421
        %v425 = vrot.slane %v424, 4
        %v426 = vadd.s32 %v424, %v425
        %v427 = vrot.slane %v426, 2
        %v428 = vadd.s32 %v426, %v427
        %v429 = vrot.slane %v428, 1
        %v430 = vadd.s32 %v428, %v429
        %s431 = vtos %v430
        %vm432 = vcmp.eq.s32.totalorder %v298, 0
        %vm433 = vcmp.eq.s32.totalorder %v328, 0
        %vm434 = vmand %vm432, %vm433
        %v435 = vstv %s431
        %v436 = vsel %vm434, %v435, 0
        %437 = vst [vmem:[%s293] sm:$0xff] %v436
        %s438 = sand.u32 %s132, 1
        %s439 = scalar_lea.sflag [#allocation5], %s438
        %s440 = sand.u32 %s132, 1
        %s441 = smul.addr %s440, 4
        %s442 = scalar_lea.vmem [#allocation8], %s441
        %s443 = sand.u32 %s158, 1
        %s444 = scalar_lea.sflag [#allocation10], %s443
        %s445 = sand.u32 %s158, 1
        %s446 = smul.addr %s445, 8
        %s447 = scalar_lea.vmem [#allocation9], %s446
        // Predicated region
        $region45: #{tpu_custom_call.1} parent=35 // pred_check
          %p448 = pneg %p142
        $region46: #{tpu_custom_call.1} parent=35 // pred_check_branch
          %450 = sbr.rel (%p448) target = $region48
        $region47: #{tpu_custom_call.1} parent=35 // pred_region
          %452 = vsyncadd %s439, 0
          %s453 = smul.addr %s30, 2
          %s454 = smul.addr %s453, 2
          %s455 = scalar_lea.hbm %s4, %s454
          %s457 = sshll.u32 %s442, 4
          %s458 = int_to_ptr.vmem [resolvable:$true] %s457
          %s459 = sshll.u32 %s455, 4
          %s460 = int_to_ptr.hbm [resolvable:$true] %s459
          %462 = dma.vmem_to_hbm [thread:$0]  %s458, 64, %s460, %s439
        $region48: #{tpu_custom_call.1} parent=35 // pred_fallthru
          _
        // Predicated region
        $region49: #{tpu_custom_call.1} parent=35 // pred_check
          %p463 = pneg %p168
        $region50: #{tpu_custom_call.1} parent=35 // pred_check_branch
          %465 = sbr.rel (%p463) target = $region52
        $region51: #{tpu_custom_call.1} parent=35 // pred_region
          %467 = vsyncadd %s444, 0
          %s468 = smul.addr %s30, 8
          %s469 = scalar_lea.hbm %s5, %s468
          %s471 = sshll.u32 %s447, 4
          %s472 = int_to_ptr.vmem [resolvable:$true] %s471
          %s473 = sshll.u32 %s469, 4
          %s474 = int_to_ptr.hbm [resolvable:$true] %s473
          %476 = dma.vmem_to_hbm [thread:$0]  %s472, 128, %s474, %s444
        $region52: #{tpu_custom_call.1} parent=35 // pred_fallthru
          _
      $region36: #{tpu_custom_call.1} parent=5 // pred_fallthru
        _
      %p477 = scmp.le.s32.totalorder 2, %s25
      // Predicated region
      $region53: #{tpu_custom_call.1} parent=5 // pred_check
        %p478 = pneg %p477
      $region54: #{tpu_custom_call.1} parent=5 // pred_check_branch
        %480 = sbr.rel (%p478) target = $region56
      $region55: #{tpu_custom_call.1} parent=5 // pred_region
        %s481 = ssub.s32 %s25, 2
        // Predicated region
        $region57: #{tpu_custom_call.1} parent=55 // pred_check
          %p482 = pneg %p148
        $region58: #{tpu_custom_call.1} parent=55 // pred_check_branch
          %484 = sbr.rel (%p482) target = $region60
        $region59: #{tpu_custom_call.1} parent=55 // pred_region
          %s485 = sand.u32 %s133, 1
          %s486 = scalar_lea.sflag [#allocation5], %s485
          %s487 = sand.u32 %s133, 1
          %s488 = smul.addr %s487, 4
          %s489 = scalar_lea.vmem [#allocation8], %s488
          %491 = dma.done %s486, 64
        $region60: #{tpu_custom_call.1} parent=55 // pred_fallthru
          _
        // Predicated region
        $region61: #{tpu_custom_call.1} parent=55 // pred_check
          %p492 = pneg %p174
        $region62: #{tpu_custom_call.1} parent=55 // pred_check_branch
          %494 = sbr.rel (%p492) target = $region64
        $region63: #{tpu_custom_call.1} parent=55 // pred_region
          %s495 = sand.u32 %s159, 1
          %s496 = scalar_lea.sflag [#allocation10], %s495
          %s497 = sand.u32 %s159, 1
          %s498 = smul.addr %s497, 8
          %s499 = scalar_lea.vmem [#allocation9], %s498
          %501 = dma.done %s496, 128
        $region64: #{tpu_custom_call.1} parent=55 // pred_fallthru
          _
      $region56: #{tpu_custom_call.1} parent=5 // pred_fallthru
        _
    $region6: #{tpu_custom_call.1} parent=1 // loop_footer
      %s29 = sadd.s32 1, %s25
    $region7: #{tpu_custom_call.1} parent=1 // loop_footer_branch
      %24 = sbr.rel target = $region3
    $region8: #{tpu_custom_call.1} parent=1 // loop_exit
      _
    %502 = vsyncpa [#allocation4], 1
    %s503 = scalar_lea.sflag [#allocation4], 1
    %504 = vsyncpa %s503, 1
    %505 = vsyncpa [#allocation7], 1
    %s506 = scalar_lea.sflag [#allocation7], 1
    %507 = vsyncpa %s506, 1
    %508 = vsyncpa [#allocation5], 1
    %s509 = scalar_lea.sflag [#allocation5], 1
    %510 = vsyncpa %s509, 1
    %511 = vsyncpa [#allocation10], 1
    %s512 = scalar_lea.sflag [#allocation10], 1
    %513 = vsyncpa %s512, 1

</llo_original>
